<compile_context>
chip_gen: v6e
topology: v6e:2x2x1
jax: 0.10.0
libtpu: 0.0.40
codegen_flags: <defaults>
</compile_context>

<pallas_src>
import functools

import jax
import jax.numpy as jnp
from jax import lax
from jax.experimental import pallas as pl
from jax.experimental.pallas import tpu as pltpu


def attention_kernel(feat_ref, hid_ref, uw_ref, ww_ref, bias_ref, aw_ref,
                     alpha_ref, ctx_ref, *, valid_l):
    feats = feat_ref[...]                                   # (Bt, L, E) bf16/f32
    Bt, L, E = feats.shape
    A = uw_ref.shape[1]

    # ---- projections on the MXU (f32 accumulation) ----
    feats2d = feats.reshape(Bt * L, E)
    u_hs = jnp.dot(feats2d, uw_ref[...],
                   preferred_element_type=jnp.float32).reshape(Bt, L, A)
    w_ah = jnp.dot(hid_ref[...], ww_ref[...],
                   preferred_element_type=jnp.float32)       # (Bt, A)

    # bias = U_b + W_b (pre-folded on the host); all activation math in f32.
    combined = jnp.tanh(u_hs + (w_ah + bias_ref[...])[:, None, :])   # (Bt, L, A)

    # ---- scores: VPU multiply + XLU lane reduction (no N=1 matmul) ----
    # A_b is omitted: a constant shift of all scores is a softmax no-op.
    scores = jnp.sum(combined * aw_ref[...][None, :, :], axis=-1)    # (Bt, L)

    if valid_l != L:  # mask padded L positions (static Python branch)
        pos = lax.broadcasted_iota(jnp.int32, (Bt, L), 1)
        scores = jnp.where(pos < valid_l, scores, -1e30)

    # ---- softmax over L (lane axis -> lane reductions) ----
    m = jnp.max(scores, axis=-1, keepdims=True)
    e = jnp.exp(scores - m)
    denom = jnp.sum(e, axis=-1, keepdims=True)
    r = pl.reciprocal(denom, approx=True)
    r = r * (2.0 - denom * r)            # one Newton step: rows sum to 1 at f32 accuracy
    alpha = e * r                         # (Bt, L), lane-dense
    alpha_ref[...] = alpha

    # ---- context ----
    if L <= 32:
        # VPU multiply + sublane reduce: avoids Bt separate M=1 MXU matmuls
        # (MRF pops serialize on the vex slot on v5e/v6e).
        ctx = jnp.sum(feats.astype(jnp.float32) * alpha[:, :, None], axis=1)
    else:
        ctx = jnp.einsum("bql,ble->bqe", alpha[:, None, :].astype(feats.dtype),
                         feats, preferred_element_type=jnp.float32)[:, 0, :]
    ctx_ref[...] = ctx


def _choose_block_b(B, L_pad, E, D, A, feat_bytes, vmem_budget):
    """Pick the batch tile: big enough to fill the MXU / amortize DMA + grid
    overhead, small enough for the VMEM budget and >=2 grid steps."""
    per_ex = (2 * (L_pad * E + D) * feat_bytes      # double-buffered input tiles
              + 2 * (L_pad + E) * 4                 # double-buffered f32 outputs
              + 2 * L_pad * A * 4                   # u_hs / combined f32 temps
              + L_pad * E * 4)                      # f32 context temp
    weights = (E * A + D * A) * feat_bytes + 2 * A * 4
    headroom = 8 << 20
    bt_vmem = max(8, (vmem_budget - weights - headroom) // per_ex)
    bt_mxu = pl.cdiv(256, L_pad)                          # Bt*L >= 256 MXU rows
    bt_dma = pl.cdiv(1 << 20, L_pad * E * feat_bytes)     # >= ~1 MiB features DMA
    bt = min(max(bt_mxu, bt_dma), bt_vmem)
    min_steps = 4 if B >= 64 else 2                       # keep both v7x TCs busy
    bt = min(bt, max(8, B // min_steps))
    return max(8, (bt // 8) * 8)


def attention_forward(features, hidden_state, params, *, block_b=None,
                      compute_dtype=jnp.bfloat16):
    """features: (B, L, E); hidden_state: (B, D).
    Returns (alpha (B, L), context (B, E)) — same as the PyTorch module."""
    B, L, E = features.shape
    D = hidden_state.shape[1]
    A = params["U_w"].shape[1]
    feat_bytes = jnp.dtype(compute_dtype).itemsize

    # VMEM budget with headroom, derived per-generation (v7x has 64 MiB/TC).
    try:
        vmem_cap = int(pltpu.get_tpu_info().vmem_capacity_bytes)
    except Exception:
        vmem_cap = 128 << 20
    vmem_budget = vmem_cap * 3 // 4

    # Pad L to a multiple of 8 so the (Bt,L,E)->(Bt*L,E) reshape is free.
    L_pad = pl.cdiv(L, 8) * 8
    if L_pad != L:
        features = jnp.pad(features, ((0, 0), (0, L_pad - L), (0, 0)))

    if block_b is None:
        Bt = _choose_block_b(B, L_pad, E, D, A, feat_bytes, vmem_budget)
    else:
        Bt = max(8, 8 * (block_b // 8))

    B_pad = pl.cdiv(B, Bt) * Bt
    if B_pad != B:
        features = jnp.pad(features, ((0, B_pad - B), (0, 0), (0, 0)))
        hidden_state = jnp.pad(hidden_state, ((0, B_pad - B), (0, 0)))

    # Boundary casts: matmul operands in compute_dtype, activations stay f32.
    features_c = features.astype(compute_dtype)
    hidden_c = hidden_state.astype(compute_dtype)
    uw = params["U_w"].astype(compute_dtype)
    ww = params["W_w"].astype(compute_dtype)
    bias = (params["U_b"] + params["W_b"]).astype(jnp.float32).reshape(1, A)
    a_row = params["A_w"].astype(jnp.float32).reshape(1, A)
    # A_b intentionally dropped: softmax is shift-invariant, outputs unchanged.

    # Scoped-VMEM: double-buffered per-step tiles + single-buffered weights + temps.
    tile_in = Bt * (L_pad * E + D) * feat_bytes
    tile_out = Bt * (L_pad + E) * 4
    temps = Bt * (2 * L_pad * A * 4 + L_pad * E * 4)
    weight_bytes = (E * A + D * A) * feat_bytes + 2 * A * 4
    vmem_needed = 2 * (tile_in + tile_out) + temps + weight_bytes + (4 << 20)
    vmem_limit = int(min(vmem_budget, max(vmem_needed, 32 << 20)))

    weight_spec = lambda shape: pl.BlockSpec(shape, lambda b: (0, 0),
                                             pipeline_mode=pl.Buffered(1))

    alpha_pad, ctx_pad = pl.pallas_call(
        functools.partial(attention_kernel, valid_l=L),
        out_shape=(
            jax.ShapeDtypeStruct((B_pad, L_pad), jnp.float32),
            jax.ShapeDtypeStruct((B_pad, E), jnp.float32),
        ),
        grid_spec=pltpu.PrefetchScalarGridSpec(
            num_scalar_prefetch=0,
            grid=(B_pad // Bt,),
            in_specs=[
                pl.BlockSpec((Bt, L_pad, E), lambda b: (b, 0, 0)),   # features tile
                pl.BlockSpec((Bt, D), lambda b: (b, 0)),             # hidden tile
                weight_spec((E, A)),                                 # U weight (in,out)
                weight_spec((D, A)),                                 # W weight (in,out)
                weight_spec((1, A)),                                 # folded bias
                weight_spec((1, A)),                                 # A weight row
            ],
            out_specs=[
                pl.BlockSpec((Bt, L_pad), lambda b: (b, 0)),         # alpha (lane-dense)
                pl.BlockSpec((Bt, E), lambda b: (b, 0)),             # context
            ],
        ),
        compiler_params=pltpu.CompilerParams(
            dimension_semantics=("parallel",),
            vmem_limit_bytes=vmem_limit),
    )(features_c, hidden_c, uw, ww, bias, a_row)

    return alpha_pad[:B, :L], ctx_pad[:B]


def reference_forward(features, hidden_state, params):
    u_hs = features @ params["U_w"] + params["U_b"][0]
    w_ah = hidden_state @ params["W_w"] + params["W_b"][0]
    combined = jnp.tanh(u_hs + w_ah[:, None, :])
    scores = (combined @ params["A_w"] + params["A_b"][0])[..., 0]
    alpha = jax.nn.softmax(scores, axis=1)
    ctx = jnp.sum(features * alpha[:, :, None], axis=1)
    return alpha, ctx


if __name__ == "__main__":
    # Small shapes consistent with the module's forward (scaled down from
    # encoder_dim=2048, decoder_dim=512, attention_dim=256). B=16 gives two
    # grid steps with Bt=8 (exercises the pipeline / both v7x TensorCores).
    B, L = 16, 8
    encoder_dim, decoder_dim, attention_dim = 32, 16, 16

    key = jax.random.PRNGKey(0)
    k_feat, k_hid, k_uw, k_ub, k_ww, k_wb, k_aw, k_ab = jax.random.split(key, 8)

    features = jax.random.normal(k_feat, (B, L, encoder_dim), jnp.float32)
    hidden_state = jax.random.normal(k_hid, (B, decoder_dim), jnp.float32)

    # nn.Linear(in, out): y = x @ W^T + b; weights stored already transposed
    # to (in, out) and biases as (1, out).
    params = {
        "U_w": 0.1 * jax.random.normal(k_uw, (encoder_dim, attention_dim), jnp.float32),
        "U_b": 0.1 * jax.random.normal(k_ub, (1, attention_dim), jnp.float32),
        "W_w": 0.1 * jax.random.normal(k_ww, (decoder_dim, attention_dim), jnp.float32),
        "W_b": 0.1 * jax.random.normal(k_wb, (1, attention_dim), jnp.float32),
        "A_w": 0.1 * jax.random.normal(k_aw, (attention_dim, 1), jnp.float32),
        "A_b": 0.1 * jax.random.normal(k_ab, (1, 1), jnp.float32),
    }

    alpha, ctx = jax.block_until_ready(
        attention_forward(features, hidden_state, params))

    alpha_ref, ctx_ref = reference_forward(features, hidden_state, params)
    # Tolerance reflects the bf16 cast of features / U_w / W_w at the
    # pallas_call boundary (activation math and accumulation stay f32).
    assert jnp.allclose(alpha, alpha_ref, atol=2e-2, rtol=2e-2), "alpha mismatch"
    assert jnp.allclose(ctx, ctx_ref, atol=2e-2, rtol=2e-2), "context mismatch"
    assert alpha.shape == (B, L) and ctx.shape == (B, encoder_dim)

    print("KERNEL_OK")
</pallas_src>

<mosaic_0001>
module attributes {stable_mosaic.version = 11 : i64} {
  func.func @attention_kernel(%arg0: i32, %arg1: memref<8x8x32xbf16, #tpu.memory_space<vmem>>, %arg2: memref<8x16xbf16, #tpu.memory_space<vmem>>, %arg3: memref<32x16xbf16, #tpu.memory_space<vmem>>, %arg4: memref<16x16xbf16, #tpu.memory_space<vmem>>, %arg5: memref<1x16xf32, #tpu.memory_space<vmem>>, %arg6: memref<1x16xf32, #tpu.memory_space<vmem>>, %arg7: memref<8x8xf32, #tpu.memory_space<vmem>>, %arg8: memref<8x32xf32, #tpu.memory_space<vmem>>) attributes {dimension_semantics = [#tpu.dimension_semantics<parallel>], iteration_bounds = array<i64: 2>, scalar_prefetch = 0 : i64, scratch_operands = 0 : i64, tpu.core_type = #tpu.core_type<tc>, window_params = [{transform_indices = @transform_0, window_bounds = array<i64: 8, 8, 32>}, {transform_indices = @transform_1, window_bounds = array<i64: 8, 16>}, {pipeline_mode = #tpu.pipeline_mode<synchronous>, transform_indices = @transform_2, window_bounds = array<i64: 32, 16>}, {pipeline_mode = #tpu.pipeline_mode<synchronous>, transform_indices = @transform_3, window_bounds = array<i64: 16, 16>}, {pipeline_mode = #tpu.pipeline_mode<synchronous>, transform_indices = @transform_4, window_bounds = array<i64: 1, 16>}, {pipeline_mode = #tpu.pipeline_mode<synchronous>, transform_indices = @transform_5, window_bounds = array<i64: 1, 16>}, {transform_indices = @transform_6, window_bounds = array<i64: 8, 8>}, {transform_indices = @transform_7, window_bounds = array<i64: 8, 32>}]} {
    %c0 = arith.constant 0 : index
    %c0_0 = arith.constant 0 : index
    %c0_1 = arith.constant 0 : index
    %0 = vector.load %arg1[%c0, %c0_0, %c0_1] : memref<8x8x32xbf16, #tpu.memory_space<vmem>>, vector<8x8x32xbf16>
    %1 = vector.shape_cast %0 : vector<8x8x32xbf16> to vector<64x32xbf16>
    %c0_2 = arith.constant 0 : index
    %c0_3 = arith.constant 0 : index
    %2 = vector.load %arg3[%c0_2, %c0_3] : memref<32x16xbf16, #tpu.memory_space<vmem>>, vector<32x16xbf16>
    %cst = arith.constant dense<0.000000e+00> : vector<64x16xf32>
    %3 = tpu.matmul %1, %2, %cst {dimension_numbers = #tpu.dot_dimension_numbers<[1], [0], [0], [1], [0, 0, 1, 1], [], []>} : vector<64x32xbf16>, vector<32x16xbf16>, vector<64x16xf32> -> vector<64x16xf32>
    %4 = vector.shape_cast %3 : vector<64x16xf32> to vector<8x8x16xf32>
    %c0_4 = arith.constant 0 : index
    %c0_5 = arith.constant 0 : index
    %5 = vector.load %arg2[%c0_4, %c0_5] : memref<8x16xbf16, #tpu.memory_space<vmem>>, vector<8x16xbf16>
    %c0_6 = arith.constant 0 : index
    %c0_7 = arith.constant 0 : index
    %6 = vector.load %arg4[%c0_6, %c0_7] : memref<16x16xbf16, #tpu.memory_space<vmem>>, vector<16x16xbf16>
    %cst_8 = arith.constant dense<0.000000e+00> : vector<8x16xf32>
    %7 = tpu.matmul %5, %6, %cst_8 {dimension_numbers = #tpu.dot_dimension_numbers<[1], [0], [0], [1], [0, 0, 1, 1], [], []>} : vector<8x16xbf16>, vector<16x16xbf16>, vector<8x16xf32> -> vector<8x16xf32>
    %c0_9 = arith.constant 0 : index
    %c0_10 = arith.constant 0 : index
    %8 = vector.load %arg5[%c0_9, %c0_10] : memref<1x16xf32, #tpu.memory_space<vmem>>, vector<1x16xf32>
    %9 = vector.broadcast %8 : vector<1x16xf32> to vector<8x16xf32>
    %10 = arith.addf %7, %9 : vector<8x16xf32>
    %11 = vector.shape_cast %10 : vector<8x16xf32> to vector<8x1x16xf32>
    %12 = vector.broadcast %11 : vector<8x1x16xf32> to vector<8x8x16xf32>
    %13 = arith.addf %4, %12 : vector<8x8x16xf32>
    %14 = math.tanh %13 : vector<8x8x16xf32>
    %c0_11 = arith.constant 0 : index
    %c0_12 = arith.constant 0 : index
    %15 = vector.load %arg6[%c0_11, %c0_12] : memref<1x16xf32, #tpu.memory_space<vmem>>, vector<1x16xf32>
    %16 = vector.shape_cast %15 : vector<1x16xf32> to vector<1x1x16xf32>
    %17 = vector.broadcast %16 : vector<1x1x16xf32> to vector<8x8x16xf32>
    %18 = arith.mulf %14, %17 : vector<8x8x16xf32>
    %cst_13 = arith.constant dense<0.000000e+00> : vector<8x8xf32>
    %19 = vector.multi_reduction <add>, %18, %cst_13 [2] : vector<8x8x16xf32> to vector<8x8xf32>
    %cst_14 = arith.constant dense<0xFF800000> : vector<8xf32>
    %20 = vector.multi_reduction <maximumf>, %19, %cst_14 [1] : vector<8x8xf32> to vector<8xf32>
    %21 = vector.shape_cast %20 : vector<8xf32> to vector<8x1xf32>
    %22 = vector.broadcast %21 : vector<8x1xf32> to vector<8x8xf32>
    %23 = arith.subf %19, %22 : vector<8x8xf32>
    %24 = math.exp %23 : vector<8x8xf32>
    %cst_15 = arith.constant dense<0.000000e+00> : vector<8xf32>
    %25 = vector.multi_reduction <add>, %24, %cst_15 [1] : vector<8x8xf32> to vector<8xf32>
    %26 = vector.shape_cast %25 : vector<8xf32> to vector<8x1xf32>
    %27 = tpu.reciprocal %26 {approx = true} : vector<8x1xf32> -> vector<8x1xf32>
    %28 = arith.mulf %26, %27 : vector<8x1xf32>
    %cst_16 = arith.constant 2.000000e+00 : f32
    %29 = vector.broadcast %cst_16 : f32 to vector<8x1xf32>
    %30 = arith.subf %29, %28 : vector<8x1xf32>
    %31 = arith.mulf %27, %30 : vector<8x1xf32>
    %32 = vector.broadcast %31 : vector<8x1xf32> to vector<8x8xf32>
    %33 = arith.mulf %24, %32 : vector<8x8xf32>
    %c0_17 = arith.constant 0 : index
    %c0_18 = arith.constant 0 : index
    %34 = vector.load %arg7[%c0_17, %c0_18] : memref<8x8xf32, #tpu.memory_space<vmem>>, vector<8x8xf32>
    tpu.vector_store %arg7[%c0_17, %c0_18], %33 {strides = array<i32>} : memref<8x8xf32, #tpu.memory_space<vmem>>, vector<8x8xf32>,
    %35 = arith.extf %0 : vector<8x8x32xbf16> to vector<8x8x32xf32>
    %36 = vector.shape_cast %33 : vector<8x8xf32> to vector<8x8x1xf32>
    %37 = vector.broadcast %36 : vector<8x8x1xf32> to vector<8x8x32xf32>
    %38 = arith.mulf %35, %37 : vector<8x8x32xf32>
    %cst_19 = arith.constant dense<0.000000e+00> : vector<8x32xf32>
    %39 = vector.multi_reduction <add>, %38, %cst_19 [1] : vector<8x8x32xf32> to vector<8x32xf32>
    %c0_20 = arith.constant 0 : index
    %c0_21 = arith.constant 0 : index
    %40 = vector.load %arg8[%c0_20, %c0_21] : memref<8x32xf32, #tpu.memory_space<vmem>>, vector<8x32xf32>
    tpu.vector_store %arg8[%c0_20, %c0_21], %39 {strides = array<i32>} : memref<8x32xf32, #tpu.memory_space<vmem>>, vector<8x32xf32>,
    return
  }
  func.func @transform_0(%arg0: i32) -> (i32, i32, i32) {
    %c0_i32 = arith.constant 0 : i32
    %c0_i32_0 = arith.constant 0 : i32
    %c0_i32_1 = arith.constant 0 : i32
    return %arg0, %c0_i32, %c0_i32_0 : i32, i32, i32
  }
  func.func @transform_1(%arg0: i32) -> (i32, i32) {
    %c0_i32 = arith.constant 0 : i32
    %c0_i32_0 = arith.constant 0 : i32
    return %arg0, %c0_i32 : i32, i32
  }
  func.func @transform_2(%arg0: i32) -> (i32, i32) {
    %c0_i32 = arith.constant 0 : i32
    %c0_i32_0 = arith.constant 0 : i32
    %c0_i32_1 = arith.constant 0 : i32
    return %c0_i32, %c0_i32_0 : i32, i32
  }
  func.func @transform_3(%arg0: i32) -> (i32, i32) {
    %c0_i32 = arith.constant 0 : i32
    %c0_i32_0 = arith.constant 0 : i32
    %c0_i32_1 = arith.constant 0 : i32
    return %c0_i32, %c0_i32_0 : i32, i32
  }
  func.func @transform_4(%arg0: i32) -> (i32, i32) {
    %c0_i32 = arith.constant 0 : i32
    %c0_i32_0 = arith.constant 0 : i32
    %c0_i32_1 = arith.constant 0 : i32
    return %c0_i32, %c0_i32_0 : i32, i32
  }
  func.func @transform_5(%arg0: i32) -> (i32, i32) {
    %c0_i32 = arith.constant 0 : i32
    %c0_i32_0 = arith.constant 0 : i32
    %c0_i32_1 = arith.constant 0 : i32
    return %c0_i32, %c0_i32_0 : i32, i32
  }
  func.func @transform_6(%arg0: i32) -> (i32, i32) {
    %c0_i32 = arith.constant 0 : i32
    %c0_i32_0 = arith.constant 0 : i32
    return %arg0, %c0_i32 : i32, i32
  }
  func.func @transform_7(%arg0: i32) -> (i32, i32) {
    %c0_i32 = arith.constant 0 : i32
    %c0_i32_0 = arith.constant 0 : i32
    return %arg0, %c0_i32 : i32, i32
  }
}

</mosaic_0001>

<llo_original>
// kernel: tpu_custom_call.1
$region0: #{tpu_custom_call.1}
  #allocation0 [shape = 'u32[]', space=smem, size = 0x4, offset = 0x4, fixed_abs, tag = 'smem constant byte address 0x4 - core index']
  #allocation1 [shape = 'u32[144,128]{1,0:T(1,128)}', space=vmem, size = 0x12000, scoped, tag = 'internal scratch']
  %s0 = inlined_call_operand.hbm [shape: bf16[16,8,32], index: 0, kind: input, shape index: {}]
  %s1 = inlined_call_operand.vmem [shape: bf16[16,16], index: 1, kind: input, shape index: {}]
  %s2 = inlined_call_operand.vmem [shape: bf16[32,16], index: 2, kind: input, shape index: {}]
  %s3 = inlined_call_operand.vmem [shape: bf16[16,16], index: 3, kind: input, shape index: {}]
  %s4 = inlined_call_operand.vmem [shape: f32[1,16], index: 4, kind: input, shape index: {}]
  %s5 = inlined_call_operand.vmem [shape: f32[1,16], index: 5, kind: input, shape index: {}]
  %s6 = inlined_call_operand.vmem [shape: f32[16,8], index: 6, kind: output, shape index: {0}]
  %s7 = inlined_call_operand.hbm [shape: f32[16,32], index: 7, kind: output, shape index: {1}]
  %8 = xla_tuple %s6, %s7
  %s9 = sld [smem:[#allocation0]]
  $region69: #{tpu_custom_call.1} parent=0
    _
  %s11 = ssub.s32 1, %s9
  %s12 = scalar_select 0, %s11, %s9
  $region1: #{tpu_custom_call.1} parent=0
    #allocation2 [shape = 'u8[32768]{0}', space=vmem, size = 0x8000, scoped, tag = 'input window, operand 0']
    #allocation3 [shape = 's32[2]{0}', space=sflag, size = 0x8, scoped, tag = 'scoped memory for tpu_custom_call.1']
    #allocation4 [shape = 's32[2]{0}', space=sflag, size = 0x8, scoped, tag = 'scoped memory for tpu_custom_call.1']
    #allocation5 [shape = 'u8[8192]{0}', space=vmem, size = 0x2000, scoped, tag = 'output window, operand 1']
    %13 = vsyncpa [#allocation3], 0
    %s14 = scalar_lea.sflag [#allocation3], 1
    %15 = vsyncpa %s14, 0
    %16 = vsyncpa [#allocation4], 0
    %s17 = scalar_lea.sflag [#allocation4], 1
    %18 = vsyncpa %s17, 0
    loop: start=0, step=1, limit=4
    $region2: #{tpu_custom_call.1} parent=1 // loop_pre_header
      _
    $region3: #{tpu_custom_call.1} parent=1 // loop_header
      %s20 = sphi 0, %s24
      %p21 = scmp.ge.s32.totalorder %s20, 4
      %s30 = sphi 0, %s32
      %s33 = sphi 0, %s30
      %s34 = sphi 0, %s33
      %s50 = sphi 0, %s34
      %s56 = sphi 0, %s58
      %s59 = sphi 0, %s56
      %s60 = sphi 0, %s59
      %s76 = sphi 0, %s60
      %s80 = sphi 0, %s80
      %s82 = sphi 0, %s80
      %s83 = sphi 0, %s82
      %s97 = sphi 0, %s83
      %s101 = sphi 0, %s101
      %s103 = sphi 0, %s101
      %s104 = sphi 0, %s103
      %s118 = sphi 0, %s104
      %s122 = sphi 0, %s122
      %s124 = sphi 0, %s122
      %s125 = sphi 0, %s124
      %s139 = sphi 0, %s125
      %s143 = sphi 0, %s143
      %s145 = sphi 0, %s143
      %s146 = sphi 0, %s145
      %s160 = sphi 0, %s146
      %s166 = sphi 0, %s168
      %s169 = sphi 0, %s166
      %s170 = sphi 0, %s169
      %s186 = sphi 0, %s170
      %s192 = sphi 0, %s194
      %s195 = sphi 0, %s192
      %s196 = sphi 0, %s195
      %s212 = sphi 0, %s196
    $region4: #{tpu_custom_call.1} parent=1 // loop_header_branch
      %23 = sbr.rel (%p21) target = $region8
    $region5: #{tpu_custom_call.1} parent=1 // loop_body
      %s25 = ssub.s32 %s20, 1
      %s26 = ssub.s32 %s20, 2
      %s27 = sadd.s32 %s20, 1
      %s28 = ssub.s32 %s20, %s27
      %p29 = scmp.eq.s32.totalorder %s28, 0
      %s31 = sadd.s32 %s30, 1
      %s32 = scalar_select %p29, %s30, %s31
      %p35 = pneg %p29
      %p36 = scmp.eq.s32.totalorder %s20, 1
      %p37 = por %p35, %p36
      %p38 = scmp.ne.s32.totalorder %s30, %s33
      %p39 = scmp.eq.s32.totalorder %s20, 0
      %p40 = por %p38, %p39
      %p41 = scmp.ne.s32.totalorder %s30, %s33
      %p42 = scmp.eq.s32.totalorder %s25, 1
      %p43 = por %p41, %p42
      %p44 = scmp.ne.s32.totalorder %s33, %s34
      %p45 = scmp.eq.s32.totalorder %s25, 0
      %p46 = por %p44, %p45
      %p47 = scmp.ne.s32.totalorder %s33, %s34
      %p48 = scmp.eq.s32.totalorder %s26, 1
      %p49 = por %p47, %p48
      %p51 = scmp.ne.s32.totalorder %s34, %s50
      %p52 = scmp.eq.s32.totalorder %s26, 0
      %p53 = por %p51, %p52
      %s54 = ssub.s32 %s20, %s27
      %p55 = scmp.eq.s32.totalorder %s54, 0
      %s57 = sadd.s32 %s56, 1
      %s58 = scalar_select %p55, %s56, %s57
      %p61 = pneg %p55
      %p62 = scmp.eq.s32.totalorder %s20, 1
      %p63 = por %p61, %p62
      %p64 = scmp.ne.s32.totalorder %s56, %s59
      %p65 = scmp.eq.s32.totalorder %s20, 0
      %p66 = por %p64, %p65
      %p67 = scmp.ne.s32.totalorder %s56, %s59
      %p68 = scmp.eq.s32.totalorder %s25, 1
      %p69 = por %p67, %p68
      %p70 = scmp.ne.s32.totalorder %s59, %s60
      %p71 = scmp.eq.s32.totalorder %s25, 0
      %p72 = por %p70, %p71
      %p73 = scmp.ne.s32.totalorder %s59, %s60
      %p74 = scmp.eq.s32.totalorder %s26, 1
      %p75 = por %p73, %p74
      %p77 = scmp.ne.s32.totalorder %s60, %s76
      %p78 = scmp.eq.s32.totalorder %s26, 0
      %p79 = por %p77, %p78
      %s81 = sadd.s32 %s80, 1
      %p84 = scmp.eq.s32.totalorder %s20, 1
      %p85 = scmp.ne.s32.totalorder %s80, %s82
      %p86 = scmp.eq.s32.totalorder %s20, 0
      %p87 = por %p85, %p86
      %p88 = scmp.ne.s32.totalorder %s80, %s82
      %p89 = scmp.eq.s32.totalorder %s25, 1
      %p90 = por %p88, %p89
      %p91 = scmp.ne.s32.totalorder %s82, %s83
      %p92 = scmp.eq.s32.totalorder %s25, 0
      %p93 = por %p91, %p92
      %p94 = scmp.ne.s32.totalorder %s82, %s83
      %p95 = scmp.eq.s32.totalorder %s26, 1
      %p96 = por %p94, %p95
      %p98 = scmp.ne.s32.totalorder %s83, %s97
      %p99 = scmp.eq.s32.totalorder %s26, 0
      %p100 = por %p98, %p99
      %s102 = sadd.s32 %s101, 1
      %p105 = scmp.eq.s32.totalorder %s20, 1
      %p106 = scmp.ne.s32.totalorder %s101, %s103
      %p107 = scmp.eq.s32.totalorder %s20, 0
      %p108 = por %p106, %p107
      %p109 = scmp.ne.s32.totalorder %s101, %s103
      %p110 = scmp.eq.s32.totalorder %s25, 1
      %p111 = por %p109, %p110
      %p112 = scmp.ne.s32.totalorder %s103, %s104
      %p113 = scmp.eq.s32.totalorder %s25, 0
      %p114 = por %p112, %p113
      %p115 = scmp.ne.s32.totalorder %s103, %s104
      %p116 = scmp.eq.s32.totalorder %s26, 1
      %p117 = por %p115, %p116
      %p119 = scmp.ne.s32.totalorder %s104, %s118
      %p120 = scmp.eq.s32.totalorder %s26, 0
      %p121 = por %p119, %p120
      %s123 = sadd.s32 %s122, 1
      %p126 = scmp.eq.s32.totalorder %s20, 1
      %p127 = scmp.ne.s32.totalorder %s122, %s124
      %p128 = scmp.eq.s32.totalorder %s20, 0
      %p129 = por %p127, %p128
      %p130 = scmp.ne.s32.totalorder %s122, %s124
      %p131 = scmp.eq.s32.totalorder %s25, 1
      %p132 = por %p130, %p131
      %p133 = scmp.ne.s32.totalorder %s124, %s125
      %p134 = scmp.eq.s32.totalorder %s25, 0
      %p135 = por %p133, %p134
      %p136 = scmp.ne.s32.totalorder %s124, %s125
      %p137 = scmp.eq.s32.totalorder %s26, 1
      %p138 = por %p136, %p137
      %p140 = scmp.ne.s32.totalorder %s125, %s139
      %p141 = scmp.eq.s32.totalorder %s26, 0
      %p142 = por %p140, %p141
      %s144 = sadd.s32 %s143, 1
      %p147 = scmp.eq.s32.totalorder %s20, 1
      %p148 = scmp.ne.s32.totalorder %s143, %s145
      %p149 = scmp.eq.s32.totalorder %s20, 0
      %p150 = por %p148, %p149
      %p151 = scmp.ne.s32.totalorder %s143, %s145
      %p152 = scmp.eq.s32.totalorder %s25, 1
      %p153 = por %p151, %p152
      %p154 = scmp.ne.s32.totalorder %s145, %s146
      %p155 = scmp.eq.s32.totalorder %s25, 0
      %p156 = por %p154, %p155
      %p157 = scmp.ne.s32.totalorder %s145, %s146
      %p158 = scmp.eq.s32.totalorder %s26, 1
      %p159 = por %p157, %p158
      %p161 = scmp.ne.s32.totalorder %s146, %s160
      %p162 = scmp.eq.s32.totalorder %s26, 0
      %p163 = por %p161, %p162
      %s164 = ssub.s32 %s20, %s27
      %p165 = scmp.eq.s32.totalorder %s164, 0
      %s167 = sadd.s32 %s166, 1
      %s168 = scalar_select %p165, %s166, %s167
      %p171 = pneg %p165
      %p172 = scmp.eq.s32.totalorder %s20, 1
      %p173 = por %p171, %p172
      %p174 = scmp.ne.s32.totalorder %s166, %s169
      %p175 = scmp.eq.s32.totalorder %s20, 0
      %p176 = por %p174, %p175
      %p177 = scmp.ne.s32.totalorder %s166, %s169
      %p178 = scmp.eq.s32.totalorder %s25, 1
      %p179 = por %p177, %p178
      %p180 = scmp.ne.s32.totalorder %s169, %s170
      %p181 = scmp.eq.s32.totalorder %s25, 0
      %p182 = por %p180, %p181
      %p183 = scmp.ne.s32.totalorder %s169, %s170
      %p184 = scmp.eq.s32.totalorder %s26, 1
      %p185 = por %p183, %p184
      %p187 = scmp.ne.s32.totalorder %s170, %s186
      %p188 = scmp.eq.s32.totalorder %s26, 0
      %p189 = por %p187, %p188
      %s190 = ssub.s32 %s20, %s27
      %p191 = scmp.eq.s32.totalorder %s190, 0
      %s193 = sadd.s32 %s192, 1
      %s194 = scalar_select %p191, %s192, %s193
      %p197 = pneg %p191
      %p198 = scmp.eq.s32.totalorder %s20, 1
      %p199 = por %p197, %p198
      %p200 = scmp.ne.s32.totalorder %s192, %s195
      %p201 = scmp.eq.s32.totalorder %s20, 0
      %p202 = por %p200, %p201
      %p203 = scmp.ne.s32.totalorder %s192, %s195
      %p204 = scmp.eq.s32.totalorder %s25, 1
      %p205 = por %p203, %p204
      %p206 = scmp.ne.s32.totalorder %s195, %s196
      %p207 = scmp.eq.s32.totalorder %s25, 0
      %p208 = por %p206, %p207
      %p209 = scmp.ne.s32.totalorder %s195, %s196
      %p210 = scmp.eq.s32.totalorder %s26, 1
      %p211 = por %p209, %p210
      %p213 = scmp.ne.s32.totalorder %s196, %s212
      %p214 = scmp.eq.s32.totalorder %s26, 0
      %p215 = por %p213, %p214
      %p216 = scmp.le.s32.totalorder 1, %s20
      %p217 = scmp.lt.s32.totalorder %s20, 3
      %p218 = pnand %p216, %p217
      %p219 = pneg %p218
      // Predicated region
      $region9: #{tpu_custom_call.1} parent=5 // pred_check
        _
      $region10: #{tpu_custom_call.1} parent=5 // pred_check_branch
        %221 = sbr.rel (%p218) target = $region12
      $region11: #{tpu_custom_call.1} parent=5 // pred_region
        %s222 = ssub.s32 %s20, 1
        // Predicated region
        $region13: #{tpu_custom_call.1} parent=11 // pred_check
          %p223 = pneg %p93
        $region14: #{tpu_custom_call.1} parent=11 // pred_check_branch
          %225 = sbr.rel (%p223) target = $region16
        $region15: #{tpu_custom_call.1} parent=11 // pred_region
          _
        $region16: #{tpu_custom_call.1} parent=11 // pred_fallthru
          _
        // Predicated region
        $region17: #{tpu_custom_call.1} parent=11 // pred_check
          %p226 = pneg %p114
        $region18: #{tpu_custom_call.1} parent=11 // pred_check_branch
          %228 = sbr.rel (%p226) target = $region20
        $region19: #{tpu_custom_call.1} parent=11 // pred_region
          _
        $region20: #{tpu_custom_call.1} parent=11 // pred_fallthru
          _
        // Predicated region
        $region21: #{tpu_custom_call.1} parent=11 // pred_check
          %p229 = pneg %p135
        $region22: #{tpu_custom_call.1} parent=11 // pred_check_branch
          %231 = sbr.rel (%p229) target = $region24
        $region23: #{tpu_custom_call.1} parent=11 // pred_region
          _
        $region24: #{tpu_custom_call.1} parent=11 // pred_fallthru
          _
        // Predicated region
        $region25: #{tpu_custom_call.1} parent=11 // pred_check
          %p232 = pneg %p156
        $region26: #{tpu_custom_call.1} parent=11 // pred_check_branch
          %234 = sbr.rel (%p232) target = $region28
        $region27: #{tpu_custom_call.1} parent=11 // pred_region
          _
        $region28: #{tpu_custom_call.1} parent=11 // pred_fallthru
          _
      $region12: #{tpu_custom_call.1} parent=5 // pred_fallthru
        _
      %p235 = scmp.lt.s32.totalorder %s20, 2
      // Predicated region
      $region29: #{tpu_custom_call.1} parent=5 // pred_check
        %p236 = pneg %p235
      $region30: #{tpu_custom_call.1} parent=5 // pred_check_branch
        %238 = sbr.rel (%p236) target = $region32
      $region31: #{tpu_custom_call.1} parent=5 // pred_region
        // Predicated region
        $region33: #{tpu_custom_call.1} parent=31 // pred_check
          %p239 = pneg %p40
        $region34: #{tpu_custom_call.1} parent=31 // pred_check_branch
          %241 = sbr.rel (%p239) target = $region36
        $region35: #{tpu_custom_call.1} parent=31 // pred_region
          %s242 = sand.u32 %s30, 1
          %s243 = scalar_lea.sflag [#allocation3], %s242
          %s244 = sand.u32 %s30, 1
          %s245 = smul.addr %s244, 32
          %s246 = scalar_lea.vmem [#allocation2], %s245
          %s247 = smul.u32 8, %s20
          %s249 = ssub.s32 512, 512
          %250 = vsyncadd %s243, %s249
          %s251 = smul.addr %s247, 64
          %s252 = scalar_lea.hbm %s0, %s251
          %s253 = sshll.u32 %s246, 4
          %s254 = int_to_ptr.vmem [resolvable:$true] %s253
          %259 = dma.hbm_to_vmem [thread:$0]  %s252, 512, %s254, %s243, 64, 64, 4
        $region36: #{tpu_custom_call.1} parent=31 // pred_fallthru
          _
        // Predicated region
        $region37: #{tpu_custom_call.1} parent=31 // pred_check
          %p260 = pneg %p66
        $region38: #{tpu_custom_call.1} parent=31 // pred_check_branch
          %262 = sbr.rel (%p260) target = $region40
        $region39: #{tpu_custom_call.1} parent=31 // pred_region
          %p263 = scmp.lt.s32.totalorder %s20, 1
          %s264 = scalar_select %p263, %s20, 1
          %s265 = smul.addr %s264, 4
          %s266 = scalar_lea.vmem %s1, %s265
        $region40: #{tpu_custom_call.1} parent=31 // pred_fallthru
          _
      $region32: #{tpu_custom_call.1} parent=5 // pred_fallthru
        _
      %p267 = scmp.le.s32.totalorder 1, %s20
      %p268 = scmp.lt.s32.totalorder %s20, 3
      %p269 = pnand %p267, %p268
      %p270 = pneg %p269
      // Predicated region
      $region41: #{tpu_custom_call.1} parent=5 // pred_check
        _
      $region42: #{tpu_custom_call.1} parent=5 // pred_check_branch
        %272 = sbr.rel (%p269) target = $region44
      $region43: #{tpu_custom_call.1} parent=5 // pred_region
        %s273 = ssub.s32 %s20, 1
        %s274 = sand.u32 %s33, 1
        %s275 = scalar_lea.sflag [#allocation3], %s274
        %s276 = sand.u32 %s33, 1
        %s277 = smul.addr %s276, 32
        %s278 = scalar_lea.vmem [#allocation2], %s277
        // Predicated region
        $region45: #{tpu_custom_call.1} parent=43 // pred_check
          %p279 = pneg %p46
        $region46: #{tpu_custom_call.1} parent=43 // pred_check_branch
          %281 = sbr.rel (%p279) target = $region48
        $region47: #{tpu_custom_call.1} parent=43 // pred_region
          %282 = dma.done %s275, 512
        $region48: #{tpu_custom_call.1} parent=43 // pred_fallthru
          _
        %s283 = sand.u32 %s33, 1
        %s284 = scalar_lea.sflag [#allocation3], %s283
        %s285 = sand.u32 %s33, 1
        %s286 = smul.addr %s285, 32
        %s287 = scalar_lea.vmem [#allocation2], %s286
        %p288 = pneg %p46
        %p289 = pneg %p43
        %p290 = scmp.lt.s32.totalorder %s25, 1
        %s291 = scalar_select %p290, %s25, 1
        %s292 = smul.addr %s291, 4
        %s293 = scalar_lea.vmem %s1, %s292
        %p294 = pneg %p72
        %p295 = pneg %p69
        %p296 = pneg %p93
        %p297 = pneg %p90
        %p298 = pneg %p114
        %p299 = pneg %p111
        %p300 = pneg %p135
        %p301 = pneg %p132
        %p302 = pneg %p156
        %p303 = pneg %p153
        %p304 = pneg %p182
        %p305 = pneg %p179
        %p306 = scmp.lt.s32.totalorder %s25, 1
        %s307 = scalar_select %p306, %s25, 1
        %s308 = smul.addr %s307, 8
        %s309 = scalar_lea.vmem %s6, %s308
        %p310 = pneg %p208
        %p311 = pneg %p205
        %s312 = sand.u32 %s195, 1
        %s313 = scalar_lea.sflag [#allocation4], %s312
        %s314 = sand.u32 %s195, 1
        %s315 = smul.addr %s314, 8
        %s316 = scalar_lea.vmem [#allocation5], %s315
        %s317 = smul.u32 8, %s25
        %p318 = scmp.lt.s32.totalorder %s25, 1
        %s319 = scalar_select %p318, %s25, 1
        %s320 = smul.addr %s319, 4
        %s321 = scalar_lea.vmem %s1, %s320
        %p322 = scmp.lt.s32.totalorder %s25, 1
        %s323 = scalar_select %p322, %s25, 1
        %s324 = smul.addr %s323, 8
        %s325 = scalar_lea.vmem %s6, %s324
        %v327 = vld [vmem:[%s278] sm:$0xf]
        %v328 = vld [vmem:[%s278 + $0x4] sm:$0xf]
        %v329 = vld [vmem:[%s278 + $0x8] sm:$0xf]
        %v330 = vld [vmem:[%s278 + $0xc] sm:$0xf]
        %v331 = vld [vmem:[%s278 + $0x10] sm:$0xf]
        %v332 = vld [vmem:[%s278 + $0x14] sm:$0xf]
        %v333 = vld [vmem:[%s278 + $0x18] sm:$0xf]
        %v334 = vld [vmem:[%s278 + $0x1c] sm:$0xf]
        %v335 = vld [vmem:[%s2] sm:$0xf]
        %v336 = vld [vmem:[%s2 + $0x4] sm:$0xf]
        %v337 = vld [vmem:[%s2 + $0x8] sm:$0xf]
        %v338 = vld [vmem:[%s2 + $0xc] sm:$0xf]
        %v347 = vunpack.c.l.b16 %v327
        %v348 = vunpack.c.l.b16 %v328
        %v349 = vunpack.c.l.b16 %v329
        %v350 = vunpack.c.l.b16 %v330
        %v351 = vunpack.c.l.b16 %v331
        %v352 = vunpack.c.l.b16 %v332
        %v353 = vunpack.c.l.b16 %v333
        %v354 = vunpack.c.l.b16 %v334
        %v355 = vpack.c.b16 %v348, %v347
        %v356 = vpack.c.b16 %v350, %v349
        %v357 = vpack.c.b16 %v352, %v351
        %v358 = vpack.c.b16 %v354, %v353
        %v363 = vunpack.c.l.b16 %v335
        %v364 = vunpack.c.l.b16 %v336
        %v365 = vunpack.c.l.b16 %v337
        %v366 = vunpack.c.l.b16 %v338
        %v367 = vpack.c.b16 %v364, %v363
        %v368 = vpack.c.b16 %v366, %v365
        %vm371 = vcmask 261120
        %v373 = vsel %vm371, %v355, 0
        %v376 = vsel %vm371, %v356, 0
        %v379 = vsel %vm371, %v357, 0
        %v382 = vsel %vm371, %v358, 0
        %384 = vmatprep.subr.bf16.mxu0 0
        %385 = vmatpush1.bf16.msra.mxu0 0
        %386 = vmatprep.subr.bf16.mxu0 0
        %387 = vmatpush1.bf16.msra.mxu0 0
        %388 = vmatprep.subr.bf16.mxu0 0
        %389 = vmatpush1.bf16.msra.mxu0 0
        %390 = vmatprep.subr.bf16.mxu0 0
        %391 = vmatpush1.bf16.msra.mxu0 0
        %392 = vmatprep.subr.bf16.mxu0 0
        %393 = vmatpush1.bf16.msra.mxu0 0
        %394 = vmatprep.subr.bf16.mxu0 0
        %395 = vmatpush1.bf16.msra.mxu0 0
        %396 = vmatprep.subr.bf16.mxu0 0
        %397 = vmatpush1.bf16.msra.mxu0 %v368
        %398 = vmatprep.subr.bf16.mxu0 0
        %399 = vmatpush1.bf16.msra.mxu0 %v367
        %400 = vmatprep.subr.bf16.mxu0 0
        %401 = vmatpush2.bf16.msra.mxu0 0
        %402 = vmatprep.subr.bf16.mxu0 0
        %403 = vmatpush2.bf16.msra.mxu0 0
        %404 = vmatprep.subr.bf16.mxu0 0
        %405 = vmatpush2.bf16.msra.mxu0 0
        %406 = vmatprep.subr.bf16.mxu0 0
        %407 = vmatpush2.bf16.msra.mxu0 0
        %408 = vmatprep.subr.bf16.mxu0 0
        %409 = vmatpush2.bf16.msra.mxu0 0
        %410 = vmatprep.subr.bf16.mxu0 0
        %411 = vmatpush2.bf16.msra.mxu0 0
        %412 = vmatprep.subr.bf16.mxu0 0
        %413 = vmatpush2.bf16.msra.mxu0 0
        %414 = vmatprep.subr.bf16.mxu0 0
        %415 = vmatpush2.bf16.msra.mxu0 0
        %416 = vmatprep.mubr.bf16.mxu0 0
        %417 = vmatmul.mubr.bf16.gmra.mxu0 %v373
        %v418 = vpop.f32.mrf.mxu0
        %v419 = vadd.f32 0.0, %v418
        %v420 = vpop.f32.mrf.mxu0
        %v421 = vpop.f32.mrf.mxu0
        %v422 = vadd.f32 0.0, %v421
        %v423 = vpop.f32.mrf.mxu0
        %424 = vmatprep.mubr.bf16.mxu0 0
        %425 = vmatmul.mubr.bf16.gmra.mxu0 %v376
        %v426 = vpop.f32.mrf.mxu0
        %v427 = vadd.f32 0.0, %v426
        %v428 = vpop.f32.mrf.mxu0
        %v429 = vpop.f32.mrf.mxu0
        %v430 = vadd.f32 0.0, %v429
        %v431 = vpop.f32.mrf.mxu0
        %432 = vmatprep.mubr.bf16.mxu0 0
        %433 = vmatmul.mubr.bf16.gmra.mxu0 %v379
        %v434 = vpop.f32.mrf.mxu0
        %v435 = vadd.f32 0.0, %v434
        %v436 = vpop.f32.mrf.mxu0
        %v437 = vpop.f32.mrf.mxu0
        %v438 = vadd.f32 0.0, %v437
        %v439 = vpop.f32.mrf.mxu0
        %440 = vmatprep.mubr.bf16.mxu0 0
        %441 = vmatmul.mubr.bf16.gmra.mxu0 %v382
        %v442 = vpop.f32.mrf.mxu0
        %v443 = vadd.f32 0.0, %v442
        %v444 = vpop.f32.mrf.mxu0
        %v445 = vpop.f32.mrf.mxu0
        %v446 = vadd.f32 0.0, %v445
        %v447 = vpop.f32.mrf.mxu0
        %448 = vdwg.mxu0
        %v449 = vld [vmem:[%s321] sm:$0xf]
        %v450 = vld [vmem:[%s3] sm:$0xf]
        %v451 = vld [vmem:[%s3 + $0x4] sm:$0xf]
        %v452 = vld [vmem:[%s4] sm:$0x1]
        %v454 = vlaneseq
        %v455 = vshrl.u32 %v454, 7
        %v456 = vsub.s32 0, %v455
        %v457 = vrot.slane %v452, %v456
        %v461 = vunpack.c.l.b16 %v450
        %v462 = vunpack.c.l.b16 %v451
        %v463 = vpack.c.b16 %v462, %v461
        %vm465 = vcmask 130048
        %v467 = vsel %vm465, %v449, 0
        %469 = vmatprep.subr.bf16.mxu0 0
        %470 = vmatpush1.bf16.msra.mxu0 0
        %471 = vmatprep.subr.bf16.mxu0 0
        %472 = vmatpush1.bf16.msra.mxu0 0
        %473 = vmatprep.subr.bf16.mxu0 0
        %474 = vmatpush1.bf16.msra.mxu0 0
        %475 = vmatprep.subr.bf16.mxu0 0
        %476 = vmatpush1.bf16.msra.mxu0 0
        %477 = vmatprep.subr.bf16.mxu0 0
        %478 = vmatpush1.bf16.msra.mxu0 0
        %479 = vmatprep.subr.bf16.mxu0 0
        %480 = vmatpush1.bf16.msra.mxu0 0
        %481 = vmatprep.subr.bf16.mxu0 0
        %482 = vmatpush1.bf16.msra.mxu0 0
        %483 = vmatprep.subr.bf16.mxu0 0
        %484 = vmatpush1.bf16.msra.mxu0 %v463
        %485 = vmatprep.subr.bf16.mxu0 0
        %486 = vmatpush2.bf16.msra.mxu0 0
        %487 = vmatprep.subr.bf16.mxu0 0
        %488 = vmatpush2.bf16.msra.mxu0 0
        %489 = vmatprep.subr.bf16.mxu0 0
        %490 = vmatpush2.bf16.msra.mxu0 0
        %491 = vmatprep.subr.bf16.mxu0 0
        %492 = vmatpush2.bf16.msra.mxu0 0
        %493 = vmatprep.subr.bf16.mxu0 0
        %494 = vmatpush2.bf16.msra.mxu0 0
        %495 = vmatprep.subr.bf16.mxu0 0
        %496 = vmatpush2.bf16.msra.mxu0 0
        %497 = vmatprep.subr.bf16.mxu0 0
        %498 = vmatpush2.bf16.msra.mxu0 0
        %499 = vmatprep.subr.bf16.mxu0 0
        %500 = vmatpush2.bf16.msra.mxu0 0
        %501 = vmatprep.mubr.bf16.mxu0 0
        %502 = vmatmul.mubr.bf16.gmra.mxu0 %v467
        %v503 = vpop.f32.mrf.mxu0
        %v504 = vadd.f32 %v457, %v503
        %v505 = vpop.f32.mrf.mxu0
        %v506 = vpop.f32.mrf.mxu0
        %v507 = vpop.f32.mrf.mxu0
        %508 = vdwg.mxu0
        %v510 = vcombine.high %v504, %v504
        %v512 = vunpack.c.l.s4 1966171168
        %v513 = vunpack.c.0.s8 %v512
        %v514 = vlaneseq
        %v515 = vshrl.u32 %v514, 7
        %v516 = vsub.s32 %v513, %v515
        %v517 = vrot.slane %v504, %v516
        %v519 = vunpack.c.l.s4 1966171168
        %v520 = vunpack.c.0.s8 %v519
        %v521 = vlaneseq
        %v522 = vshrl.u32 %v521, 7
        %v523 = vsub.s32 %v520, %v522
        %v524 = vrot.slane %v510, %v523
        %v525 = vcombine.high %v517, %v517
        %v526 = vcombine.high %v524, %v524
        %v528 = vunpack.c.l.s4 1966171168
        %v529 = vunpack.c.0.s8 %v528
        %v530 = vlaneseq
        %v531 = vshrl.u32 %v530, 7
        %v532 = vsub.s32 %v529, %v531
        %v533 = vrot.slane %v517, %v532
        %v535 = vunpack.c.l.s4 1966171168
        %v536 = vunpack.c.0.s8 %v535
        %v537 = vlaneseq
        %v538 = vshrl.u32 %v537, 7
        %v539 = vsub.s32 %v536, %v538
        %v540 = vrot.slane %v524, %v539
        %v542 = vunpack.c.l.s4 1966171168
        %v543 = vunpack.c.0.s8 %v542
        %v544 = vlaneseq
        %v545 = vshrl.u32 %v544, 7
        %v546 = vsub.s32 %v543, %v545
        %v547 = vrot.slane %v525, %v546
        %v549 = vunpack.c.l.s4 1966171168
        %v550 = vunpack.c.0.s8 %v549
        %v551 = vlaneseq
        %v552 = vshrl.u32 %v551, 7
        %v553 = vsub.s32 %v550, %v552
        %v554 = vrot.slane %v526, %v553
        %v555 = vcombine.high %v533, %v533
        %v556 = vcombine.high %v540, %v540
        %v557 = vcombine.high %v547, %v547
        %v558 = vcombine.high %v554, %v554
        %v559 = vlaneseq
        %v560 = vshrl.u32 %v559, 7
        %v561 = vsub.s32 0, %v560
        %v562 = vrot.slane %v533, %v561
        %v563 = vlaneseq
        %v564 = vshrl.u32 %v563, 7
        %v565 = vsub.s32 0, %v564
        %v566 = vrot.slane %v547, %v565
        %v567 = vlaneseq
        %v568 = vshrl.u32 %v567, 7
        %v569 = vsub.s32 0, %v568
        %v570 = vrot.slane %v555, %v569
        %v571 = vlaneseq
        %v572 = vshrl.u32 %v571, 7
        %v573 = vsub.s32 0, %v572
        %v574 = vrot.slane %v557, %v573
        %v575 = vlaneseq
        %v576 = vshrl.u32 %v575, 7
        %v577 = vsub.s32 0, %v576
        %v578 = vrot.slane %v540, %v577
        %v579 = vlaneseq
        %v580 = vshrl.u32 %v579, 7
        %v581 = vsub.s32 0, %v580
        %v582 = vrot.slane %v554, %v581
        %v583 = vlaneseq
        %v584 = vshrl.u32 %v583, 7
        %v585 = vsub.s32 0, %v584
        %v586 = vrot.slane %v556, %v585
        %v587 = vlaneseq
        %v588 = vshrl.u32 %v587, 7
        %v589 = vsub.s32 0, %v588
        %v590 = vrot.slane %v558, %v589
        %v599 = vadd.f32 %v419, %v562
        %v600 = vadd.f32 %v422, %v566
        %v601 = vadd.f32 %v427, %v570
        %v602 = vadd.f32 %v430, %v574
        %v603 = vadd.f32 %v435, %v578
        %v604 = vadd.f32 %v438, %v582
        %v605 = vadd.f32 %v443, %v586
        %v606 = vadd.f32 %v446, %v590
        %v607 = vtanh.pop %v599
        %v608 = vtanh.pop %v600
        %v609 = vtanh.pop %v601
        %v610 = vtanh.pop %v602
        %v611 = vtanh.pop %v603
        %v612 = vtanh.pop %v604
        %v613 = vtanh.pop %v605
        %v614 = vtanh.pop %v606
        %v615 = vld [vmem:[%s5] sm:$0x1]
        %v617 = vlaneseq
        %v618 = vshrl.u32 %v617, 7
        %v619 = vsub.s32 0, %v618
        %v620 = vrot.slane %v615, %v619
        %v622 = vmul.f32 %v607, %v620
        %v623 = vmul.f32 %v608, %v620
        %v624 = vmul.f32 %v609, %v620
        %v625 = vmul.f32 %v610, %v620
        %v626 = vmul.f32 %v611, %v620
        %v627 = vmul.f32 %v612, %v620
        %v628 = vmul.f32 %v613, %v620
        %v629 = vmul.f32 %v614, %v620
        %v630 = vsel %vm465, %v622, 0.0
        %631 = vadd.xlane.f32.xlu0 %v630
        %v632 = vpop.xlane.xlu0 %631
        %v633 = vsel %vm465, %v623, 0.0
        %634 = vadd.xlane.f32.xlu0 %v633
        %v635 = vpop.xlane.xlu0 %634
        %v636 = vsel %vm465, %v624, 0.0
        %637 = vadd.xlane.f32.xlu0 %v636
        %v638 = vpop.xlane.xlu0 %637
        %v639 = vsel %vm465, %v625, 0.0
        %640 = vadd.xlane.f32.xlu0 %v639
        %v641 = vpop.xlane.xlu0 %640
        %v642 = vsel %vm465, %v626, 0.0
        %643 = vadd.xlane.f32.xlu0 %v642
        %v644 = vpop.xlane.xlu0 %643
        %v645 = vsel %vm465, %v627, 0.0
        %646 = vadd.xlane.f32.xlu0 %v645
        %v647 = vpop.xlane.xlu0 %646
        %v648 = vsel %vm465, %v628, 0.0
        %649 = vadd.xlane.f32.xlu0 %v648
        %v650 = vpop.xlane.xlu0 %649
        %v651 = vsel %vm465, %v629, 0.0
        %652 = vadd.xlane.f32.xlu0 %v651
        %v653 = vpop.xlane.xlu0 %652
        %v662 = vlaneseq
        %v663 = vand.u32 %v662, 127
        %v664 = vlaneseq
        %v665 = vshrl.u32 %v664, 7
        %v666 = vsub.s32 %v663, %v665
        %v667 = vrot.slane %v632, %v666
        %v668 = vlaneseq
        %v669 = vshrl.u32 %v668, 7
        %v670 = vsub.s32 %v663, %v669
        %v671 = vrot.slane %v635, %v670
        %v672 = vlaneseq
        %v673 = vshrl.u32 %v672, 7
        %v674 = vsub.s32 %v663, %v673
        %v675 = vrot.slane %v638, %v674
        %v676 = vlaneseq
        %v677 = vshrl.u32 %v676, 7
        %v678 = vsub.s32 %v663, %v677
        %v679 = vrot.slane %v641, %v678
        %v680 = vlaneseq
        %v681 = vshrl.u32 %v680, 7
        %v682 = vsub.s32 %v663, %v681
        %v683 = vrot.slane %v644, %v682
        %v684 = vlaneseq
        %v685 = vshrl.u32 %v684, 7
        %v686 = vsub.s32 %v663, %v685
        %v687 = vrot.slane %v647, %v686
        %v688 = vlaneseq
        %v689 = vshrl.u32 %v688, 7
        %v690 = vsub.s32 %v663, %v689
        %v691 = vrot.slane %v650, %v690
        %v692 = vlaneseq
        %v693 = vshrl.u32 %v692, 7
        %v694 = vsub.s32 %v663, %v693
        %v695 = vrot.slane %v653, %v694
        %vm696 = vcmask 1041409
        %v697 = vsel %vm696, %v671, %v667
        %vm698 = vcmask 1042434
        %v699 = vsel %vm698, %v675, %v697
        %vm700 = vcmask 1043459
        %v701 = vsel %vm700, %v679, %v699
        %vm702 = vcmask 1044484
        %v703 = vsel %vm702, %v683, %v701
        %vm704 = vcmask 1045509
        %v705 = vsel %vm704, %v687, %v703
        %vm706 = vcmask 1046534
        %v707 = vsel %vm706, %v691, %v705
        %vm708 = vcmask 1047559
        %v709 = vsel %vm708, %v695, %v707
        %vm711 = vcmask 64512
        %v712 = vsel %vm711, %v709, -inf
        %713 = vmax.xlane.f32.xlu0 %v712
        %v714 = vpop.xlane.xlu0 %713
        %v716 = vlaneseq
        %v717 = vshrl.u32 %v716, 7
        %v718 = vsub.s32 0, %v717
        %v719 = vrot.slane %v714, %v718
        %v720 = vlaneseq
        %v721 = vshrl.u32 %v720, 7
        %v722 = vsub.s32 1, %v721
        %v723 = vrot.slane %v714, %v722
        %v724 = vlaneseq
        %v725 = vshrl.u32 %v724, 7
        %v726 = vsub.s32 2, %v725
        %v727 = vrot.slane %v714, %v726
        %v728 = vlaneseq
        %v729 = vshrl.u32 %v728, 7
        %v730 = vsub.s32 3, %v729
        %v731 = vrot.slane %v714, %v730
        %v732 = vlaneseq
        %v733 = vshrl.u32 %v732, 7
        %v734 = vsub.s32 4, %v733
        %v735 = vrot.slane %v714, %v734
        %v736 = vlaneseq
        %v737 = vshrl.u32 %v736, 7
        %v738 = vsub.s32 5, %v737
        %v739 = vrot.slane %v714, %v738
        %v740 = vlaneseq
        %v741 = vshrl.u32 %v740, 7
        %v742 = vsub.s32 6, %v741
        %v743 = vrot.slane %v714, %v742
        %v744 = vlaneseq
        %v745 = vshrl.u32 %v744, 7
        %v746 = vsub.s32 7, %v745
        %v747 = vrot.slane %v714, %v746
        %v756 = vsub.f32 %v632, %v719
        %v757 = vsub.f32 %v635, %v723
        %v758 = vsub.f32 %v638, %v727
        %v759 = vsub.f32 %v641, %v731
        %v760 = vsub.f32 %v644, %v735
        %v761 = vsub.f32 %v647, %v739
        %v762 = vsub.f32 %v650, %v743
        %v763 = vsub.f32 %v653, %v747
        %v764 = vmul.f32 %v756, 1.442695
        %v765 = vpow.pop %v764
        %v766 = vmul.f32 %v757, 1.442695
        %v767 = vpow.pop %v766
        %v768 = vmul.f32 %v758, 1.442695
        %v769 = vpow.pop %v768
        %v770 = vmul.f32 %v759, 1.442695
        %v771 = vpow.pop %v770
        %v772 = vmul.f32 %v760, 1.442695
        %v773 = vpow.pop %v772
        %v774 = vmul.f32 %v761, 1.442695
        %v775 = vpow.pop %v774
        %v776 = vmul.f32 %v762, 1.442695
        %v777 = vpow.pop %v776
        %v778 = vmul.f32 %v763, 1.442695
        %v779 = vpow.pop %v778
        %788 = vset.pattern.permute.xlu0 0
        %789 = vperm.xlu0 %788, %v765
        %v790 = vpop.permute.xlu0 %789
        %791 = vset.pattern.permute.xlu0 0
        %792 = vperm.xlu0 %791, %v767
        %v793 = vpop.permute.xlu0 %792
        %794 = vset.pattern.permute.xlu0 0
        %795 = vperm.xlu0 %794, %v769
        %v796 = vpop.permute.xlu0 %795
        %797 = vset.pattern.permute.xlu0 0
        %798 = vperm.xlu0 %797, %v771
        %v799 = vpop.permute.xlu0 %798
        %800 = vset.pattern.permute.xlu0 0
        %801 = vperm.xlu0 %800, %v773
        %v802 = vpop.permute.xlu0 %801
        %803 = vset.pattern.permute.xlu0 0
        %804 = vperm.xlu0 %803, %v775
        %v805 = vpop.permute.xlu0 %804
        %806 = vset.pattern.permute.xlu0 0
        %807 = vperm.xlu0 %806, %v777
        %v808 = vpop.permute.xlu0 %807
        %809 = vset.pattern.permute.xlu0 0
        %810 = vperm.xlu0 %809, %v779
        %v811 = vpop.permute.xlu0 %810
        %v812 = vlaneseq
        %v813 = vshrl.u32 %v812, 7
        %v814 = vsub.s32 %v663, %v813
        %v815 = vrot.slane %v790, %v814
        %v816 = vlaneseq
        %v817 = vshrl.u32 %v816, 7
        %v818 = vsub.s32 %v663, %v817
        %v819 = vrot.slane %v793, %v818
        %v820 = vlaneseq
        %v821 = vshrl.u32 %v820, 7
        %v822 = vsub.s32 %v663, %v821
        %v823 = vrot.slane %v796, %v822
        %v824 = vlaneseq
        %v825 = vshrl.u32 %v824, 7
        %v826 = vsub.s32 %v663, %v825
        %v827 = vrot.slane %v799, %v826
        %v828 = vlaneseq
        %v829 = vshrl.u32 %v828, 7
        %v830 = vsub.s32 %v663, %v829
        %v831 = vrot.slane %v802, %v830
        %v832 = vlaneseq
        %v833 = vshrl.u32 %v832, 7
        %v834 = vsub.s32 %v663, %v833
        %v835 = vrot.slane %v805, %v834
        %v836 = vlaneseq
        %v837 = vshrl.u32 %v836, 7
        %v838 = vsub.s32 %v663, %v837
        %v839 = vrot.slane %v808, %v838
        %v840 = vlaneseq
        %v841 = vshrl.u32 %v840, 7
        %v842 = vsub.s32 %v663, %v841
        %v843 = vrot.slane %v811, %v842
        %v844 = vsel %vm696, %v819, %v815
        %v845 = vsel %vm698, %v823, %v844
        %v846 = vsel %vm700, %v827, %v845
        %v847 = vsel %vm702, %v831, %v846
        %v848 = vsel %vm704, %v835, %v847
        %v849 = vsel %vm706, %v839, %v848
        %v850 = vsel %vm708, %v843, %v849
        %v852 = vsel %vm711, %v850, 0.0
        %853 = vadd.xlane.f32.xlu0 %v852
        %v854 = vpop.xlane.xlu0 %853
        %v855 = vrcp.pop %v854
        %v856 = vmul.f32 %v854, %v855
        %v857 = vsub.f32 2.0, %v856
        %v858 = vmul.f32 %v855, %v857
        %v860 = vlaneseq
        %v861 = vshrl.u32 %v860, 7
        %v862 = vsub.s32 0, %v861
        %v863 = vrot.slane %v858, %v862
        %v864 = vlaneseq
        %v865 = vshrl.u32 %v864, 7
        %v866 = vsub.s32 1, %v865
        %v867 = vrot.slane %v858, %v866
        %v868 = vlaneseq
        %v869 = vshrl.u32 %v868, 7
        %v870 = vsub.s32 2, %v869
        %v871 = vrot.slane %v858, %v870
        %v872 = vlaneseq
        %v873 = vshrl.u32 %v872, 7
        %v874 = vsub.s32 3, %v873
        %v875 = vrot.slane %v858, %v874
        %v876 = vlaneseq
        %v877 = vshrl.u32 %v876, 7
        %v878 = vsub.s32 4, %v877
        %v879 = vrot.slane %v858, %v878
        %v880 = vlaneseq
        %v881 = vshrl.u32 %v880, 7
        %v882 = vsub.s32 5, %v881
        %v883 = vrot.slane %v858, %v882
        %v884 = vlaneseq
        %v885 = vshrl.u32 %v884, 7
        %v886 = vsub.s32 6, %v885
        %v887 = vrot.slane %v858, %v886
        %v888 = vlaneseq
        %v889 = vshrl.u32 %v888, 7
        %v890 = vsub.s32 7, %v889
        %v891 = vrot.slane %v858, %v890
        %v900 = vmul.f32 %v765, %v863
        %v901 = vmul.f32 %v767, %v867
        %v902 = vmul.f32 %v769, %v871
        %v903 = vmul.f32 %v771, %v875
        %v904 = vmul.f32 %v773, %v879
        %v905 = vmul.f32 %v775, %v883
        %v906 = vmul.f32 %v777, %v887
        %v907 = vmul.f32 %v779, %v891
        %916 = vset.pattern.permute.xlu0 0
        %917 = vperm.xlu0 %916, %v900
        %v918 = vpop.permute.xlu0 %917
        %919 = vset.pattern.permute.xlu0 0
        %920 = vperm.xlu0 %919, %v901
        %v921 = vpop.permute.xlu0 %920
        %922 = vset.pattern.permute.xlu0 0
        %923 = vperm.xlu0 %922, %v902
        %v924 = vpop.permute.xlu0 %923
        %925 = vset.pattern.permute.xlu0 0
        %926 = vperm.xlu0 %925, %v903
        %v927 = vpop.permute.xlu0 %926
        %928 = vset.pattern.permute.xlu0 0
        %929 = vperm.xlu0 %928, %v904
        %v930 = vpop.permute.xlu0 %929
        %931 = vset.pattern.permute.xlu0 0
        %932 = vperm.xlu0 %931, %v905
        %v933 = vpop.permute.xlu0 %932
        %934 = vset.pattern.permute.xlu0 0
        %935 = vperm.xlu0 %934, %v906
        %v936 = vpop.permute.xlu0 %935
        %937 = vset.pattern.permute.xlu0 0
        %938 = vperm.xlu0 %937, %v907
        %v939 = vpop.permute.xlu0 %938
        %v940 = vlaneseq
        %v941 = vshrl.u32 %v940, 7
        %v942 = vsub.s32 %v663, %v941
        %v943 = vrot.slane %v918, %v942
        %v944 = vlaneseq
        %v945 = vshrl.u32 %v944, 7
        %v946 = vsub.s32 %v663, %v945
        %v947 = vrot.slane %v921, %v946
        %v948 = vlaneseq
        %v949 = vshrl.u32 %v948, 7
        %v950 = vsub.s32 %v663, %v949
        %v951 = vrot.slane %v924, %v950
        %v952 = vlaneseq
        %v953 = vshrl.u32 %v952, 7
        %v954 = vsub.s32 %v663, %v953
        %v955 = vrot.slane %v927, %v954
        %v956 = vlaneseq
        %v957 = vshrl.u32 %v956, 7
        %v958 = vsub.s32 %v663, %v957
        %v959 = vrot.slane %v930, %v958
        %v960 = vlaneseq
        %v961 = vshrl.u32 %v960, 7
        %v962 = vsub.s32 %v663, %v961
        %v963 = vrot.slane %v933, %v962
        %v964 = vlaneseq
        %v965 = vshrl.u32 %v964, 7
        %v966 = vsub.s32 %v663, %v965
        %v967 = vrot.slane %v936, %v966
        %v968 = vlaneseq
        %v969 = vshrl.u32 %v968, 7
        %v970 = vsub.s32 %v663, %v969
        %v971 = vrot.slane %v939, %v970
        %v972 = vsel %vm696, %v947, %v943
        %v973 = vsel %vm698, %v951, %v972
        %v974 = vsel %vm700, %v955, %v973
        %v975 = vsel %vm702, %v959, %v974
        %v976 = vsel %vm704, %v963, %v975
        %v977 = vsel %vm706, %v967, %v976
        %v978 = vsel %vm708, %v971, %v977
        %980 = vst.msk [vmem:[%s325] sm:$0xff] %vm711, %v978
        %v981 = vunpack.c.l.bf16 %v327
        %v982 = vunpack.c.l.bf16 %v328
        %v983 = vunpack.c.l.bf16 %v329
        %v984 = vunpack.c.l.bf16 %v330
        %v985 = vunpack.c.l.bf16 %v331
        %v986 = vunpack.c.l.bf16 %v332
        %v987 = vunpack.c.l.bf16 %v333
        %v988 = vunpack.c.l.bf16 %v334
        %v997 = vmul.f32 %v981, %v918
        %v998 = vmul.f32 %v982, %v921
        %v999 = vmul.f32 %v983, %v924
        %v1000 = vmul.f32 %v984, %v927
        %v1001 = vmul.f32 %v985, %v930
        %v1002 = vmul.f32 %v986, %v933
        %v1003 = vmul.f32 %v987, %v936
        %v1004 = vmul.f32 %v988, %v939
        %v1005 = vsel %vm371, %v997, 0.0
        %v1006 = vrot.slane %v1005, 4
        %v1007 = vadd.f32 %v1005, %v1006
        %v1008 = vrot.slane %v1007, 2
        %v1009 = vadd.f32 %v1007, %v1008
        %v1010 = vrot.slane %v1009, 1
        %v1011 = vadd.f32 %v1009, %v1010
        %v1012 = vsel %vm371, %v998, 0.0
        %v1013 = vrot.slane %v1012, 4
        %v1014 = vadd.f32 %v1012, %v1013
        %v1015 = vrot.slane %v1014, 2
        %v1016 = vadd.f32 %v1014, %v1015
        %v1017 = vrot.slane %v1016, 1
        %v1018 = vadd.f32 %v1016, %v1017
        %v1019 = vsel %vm371, %v999, 0.0
        %v1020 = vrot.slane %v1019, 4
        %v1021 = vadd.f32 %v1019, %v1020
        %v1022 = vrot.slane %v1021, 2
        %v1023 = vadd.f32 %v1021, %v1022
        %v1024 = vrot.slane %v1023, 1
        %v1025 = vadd.f32 %v1023, %v1024
        %v1026 = vsel %vm371, %v1000, 0.0
        %v1027 = vrot.slane %v1026, 4
        %v1028 = vadd.f32 %v1026, %v1027
        %v1029 = vrot.slane %v1028, 2
        %v1030 = vadd.f32 %v1028, %v1029
        %v1031 = vrot.slane %v1030, 1
        %v1032 = vadd.f32 %v1030, %v1031
        %v1033 = vsel %vm371, %v1001, 0.0
        %v1034 = vrot.slane %v1033, 4
        %v1035 = vadd.f32 %v1033, %v1034
        %v1036 = vrot.slane %v1035, 2
        %v1037 = vadd.f32 %v1035, %v1036
        %v1038 = vrot.slane %v1037, 1
        %v1039 = vadd.f32 %v1037, %v1038
        %v1040 = vsel %vm371, %v1002, 0.0
        %v1041 = vrot.slane %v1040, 4
        %v1042 = vadd.f32 %v1040, %v1041
        %v1043 = vrot.slane %v1042, 2
        %v1044 = vadd.f32 %v1042, %v1043
        %v1045 = vrot.slane %v1044, 1
        %v1046 = vadd.f32 %v1044, %v1045
        %v1047 = vsel %vm371, %v1003, 0.0
        %v1048 = vrot.slane %v1047, 4
        %v1049 = vadd.f32 %v1047, %v1048
        %v1050 = vrot.slane %v1049, 2
        %v1051 = vadd.f32 %v1049, %v1050
        %v1052 = vrot.slane %v1051, 1
        %v1053 = vadd.f32 %v1051, %v1052
        %v1054 = vsel %vm371, %v1004, 0.0
        %v1055 = vrot.slane %v1054, 4
        %v1056 = vadd.f32 %v1054, %v1055
        %v1057 = vrot.slane %v1056, 2
        %v1058 = vadd.f32 %v1056, %v1057
        %v1059 = vrot.slane %v1058, 1
        %v1060 = vadd.f32 %v1058, %v1059
        %v1069 = vsel %vm696, %v1018, %v1011
        %v1070 = vsel %vm698, %v1025, %v1069
        %v1071 = vsel %vm700, %v1032, %v1070
        %v1072 = vsel %vm702, %v1039, %v1071
        %v1073 = vsel %vm704, %v1046, %v1072
        %v1074 = vsel %vm706, %v1053, %v1073
        %v1075 = vsel %vm708, %v1060, %v1074
        %1077 = vst.msk [vmem:[%s316] sm:$0xff] %vm371, %v1075
        %p1078 = scmp.lt.s32.totalorder %s25, 1
        %s1079 = scalar_select %p1078, %s25, 1
        %s1080 = smul.addr %s1079, 8
        %s1081 = scalar_lea.vmem %s6, %s1080
        %s1082 = sand.u32 %s195, 1
        %s1083 = scalar_lea.sflag [#allocation4], %s1082
        %s1084 = sand.u32 %s195, 1
        %s1085 = smul.addr %s1084, 8
        %s1086 = scalar_lea.vmem [#allocation5], %s1085
        // Predicated region
        $region49: #{tpu_custom_call.1} parent=43 // pred_check
          %p1087 = pneg %p179
        $region50: #{tpu_custom_call.1} parent=43 // pred_check_branch
          %1089 = sbr.rel (%p1087) target = $region52
        $region51: #{tpu_custom_call.1} parent=43 // pred_region
          _
        $region52: #{tpu_custom_call.1} parent=43 // pred_fallthru
          _
        // Predicated region
        $region53: #{tpu_custom_call.1} parent=43 // pred_check
          %p1090 = pneg %p205
        $region54: #{tpu_custom_call.1} parent=43 // pred_check_branch
          %1092 = sbr.rel (%p1090) target = $region56
        $region55: #{tpu_custom_call.1} parent=43 // pred_region
          %s1094 = ssub.s32 128, 128
          %1095 = vsyncadd %s1083, %s1094
          %s1096 = smul.addr %s25, 128
          %s1097 = scalar_lea.hbm %s7, %s1096
          %s1099 = sshll.u32 %s1086, 4
          %s1100 = int_to_ptr.vmem [resolvable:$true] %s1099
          %1102 = dma.vmem_to_hbm [thread:$0]  %s1100, 128, %s1097, %s1083
        $region56: #{tpu_custom_call.1} parent=43 // pred_fallthru
          _
      $region44: #{tpu_custom_call.1} parent=5 // pred_fallthru
        _
      %p1103 = scmp.le.s32.totalorder 2, %s20
      // Predicated region
      $region57: #{tpu_custom_call.1} parent=5 // pred_check
        %p1104 = pneg %p1103
      $region58: #{tpu_custom_call.1} parent=5 // pred_check_branch
        %1106 = sbr.rel (%p1104) target = $region60
      $region59: #{tpu_custom_call.1} parent=5 // pred_region
        %s1107 = ssub.s32 %s20, 2
        // Predicated region
        $region61: #{tpu_custom_call.1} parent=59 // pred_check
          %p1108 = pneg %p185
        $region62: #{tpu_custom_call.1} parent=59 // pred_check_branch
          %1110 = sbr.rel (%p1108) target = $region64
        $region63: #{tpu_custom_call.1} parent=59 // pred_region
          %p1111 = scmp.lt.s32.totalorder %s26, 1
          %s1112 = scalar_select %p1111, %s26, 1
          %s1113 = smul.addr %s1112, 8
          %s1114 = scalar_lea.vmem %s6, %s1113
        $region64: #{tpu_custom_call.1} parent=59 // pred_fallthru
          _
        // Predicated region
        $region65: #{tpu_custom_call.1} parent=59 // pred_check
          %p1115 = pneg %p211
        $region66: #{tpu_custom_call.1} parent=59 // pred_check_branch
          %1117 = sbr.rel (%p1115) target = $region68
        $region67: #{tpu_custom_call.1} parent=59 // pred_region
          %s1118 = sand.u32 %s196, 1
          %s1119 = scalar_lea.sflag [#allocation4], %s1118
          %s1120 = sand.u32 %s196, 1
          %s1121 = smul.addr %s1120, 8
          %s1122 = scalar_lea.vmem [#allocation5], %s1121
          %1123 = dma.done %s1119, 128
        $region68: #{tpu_custom_call.1} parent=59 // pred_fallthru
          _
      $region60: #{tpu_custom_call.1} parent=5 // pred_fallthru
        _
    $region6: #{tpu_custom_call.1} parent=1 // loop_footer
      %s24 = sadd.s32 1, %s20
    $region7: #{tpu_custom_call.1} parent=1 // loop_footer_branch
      %19 = sbr.rel target = $region3
    $region8: #{tpu_custom_call.1} parent=1 // loop_exit
      _
    %1124 = vsyncpa [#allocation3], 1
    %s1125 = scalar_lea.sflag [#allocation3], 1
    %1126 = vsyncpa %s1125, 1
    %1127 = vsyncpa [#allocation4], 1
    %s1128 = scalar_lea.sflag [#allocation4], 1
    %1129 = vsyncpa %s1128, 1

</llo_original>
